<compile_context>
chip_gen: v7x
topology: tpu7x:2x2x1
jax: 0.10.0
libtpu: 0.0.40
codegen_flags: <defaults>
</compile_context>

<pallas_src>
import functools

import jax
import jax.numpy as jnp
from jax.experimental import pallas as pl
from jax.experimental.pallas import tpu as pltpu


def _round_up(x: int, m: int) -> int:
    return ((x + m - 1) // m) * m


def _layernorm_kernel(x_ref, ab_ref, o_ref, *, eps: float, feat: int):
    # x_ref: (TR, F) tile of rows; ab_ref: (8, F) with rows 0/1 = alpha/bias.
    x = x_ref[...]
    if x.dtype != jnp.float32:
        x = x.astype(jnp.float32)

    ab = ab_ref[...]
    alpha = ab[0:1, :]
    bias = ab[1:2, :]

    # Two-pass statistics: mean, then unbiased variance from the residuals.
    mean = jnp.sum(x, axis=-1, keepdims=True) * jnp.float32(1.0 / feat)
    diff = x - mean
    # torch.std is unbiased (divide by F - 1); F == 1 -> 0/0 = NaN like torch.
    var = jnp.sum(diff * diff, axis=-1, keepdims=True) / jnp.float32(feat - 1)
    std = jnp.sqrt(var)
    # eps is added to STD (not variance) to match the PyTorch module exactly.
    inv = pl.reciprocal(std + jnp.float32(eps), approx=False)

    y = alpha * (diff * inv) + bias
    o_ref[...] = y.astype(o_ref.dtype)


def _choose_row_tile(rows: int, feat: int, itemsize: int, sublane: int,
                     budget_bytes: int) -> int:
    # Pipeline buffers: double-buffered input tile + double-buffered output
    # tile = 4 * row_tile * feat * itemsize bytes (the (8, F) param block is
    # negligible).
    per_row = 4 * feat * itemsize
    max_rows = max(sublane, budget_bytes // max(per_row, 1))
    tile = (max_rows // sublane) * sublane
    tile = min(tile, 2048)  # amortization plateau even at v7x bandwidth
    # Ensure >= 2 grid steps whenever the row count allows, so megacore
    # ("parallel") sharding on v7x has work for both TensorCores.  On v5e/v6e
    # the extra grid step costs ~0.35 us — noise.
    half = _round_up(pl.cdiv(rows, 2), sublane)
    tile = min(tile, max(sublane, half))
    return max(sublane, tile)


def layer_norm_pallas(x2d, alpha, bias, *, eps: float):
    """x2d: (R, F) array; alpha/bias: (F,). Returns (R, F) LayerNorm output."""
    R, F = x2d.shape
    itemsize = jnp.dtype(x2d.dtype).itemsize
    # Sublane packing: 8 rows/vreg for 4-byte, 16 for 2-byte, 32 for 1-byte.
    sublane = max(8, 32 // max(itemsize, 1))

    # Generation-aware VMEM sizing (v7x: 64 MiB, v5e/v6e: 128 MiB per core).
    try:
        vmem_cap = int(pltpu.get_tpu_info().vmem_capacity_bytes)
    except Exception:  # interpret mode / unknown platform
        vmem_cap = 64 * 1024 * 1024
    budget = min(40 * 1024 * 1024, max(16 * 1024 * 1024, vmem_cap // 3))
    vmem_limit = int(min(vmem_cap - 8 * 1024 * 1024, budget + 16 * 1024 * 1024))

    row_tile = _choose_row_tile(R, F, itemsize, sublane, budget)
    grid = pl.cdiv(R, row_tile)

    # Fuse alpha/bias into one (8, F) resident block (rows 2..7 are zero pad)
    # so its per-step loads are unmasked full-sublane vld.
    ab = (
        jnp.zeros((8, F), dtype=jnp.float32)
        .at[0].set(alpha.astype(jnp.float32))
        .at[1].set(bias.astype(jnp.float32))
    )

    kernel = functools.partial(_layernorm_kernel, eps=eps, feat=F)
    out = pl.pallas_call(
        kernel,
        out_shape=jax.ShapeDtypeStruct((R, F), x2d.dtype),
        grid=(grid,),
        in_specs=[
            # Last dim equals the full array dim, so F need not be a multiple
            # of 128; the ragged last row block is masked on write-back.
            pl.BlockSpec((row_tile, F), lambda i: (i, 0)),
            pl.BlockSpec((8, F), lambda i: (0, 0)),   # stays resident
        ],
        out_specs=pl.BlockSpec((row_tile, F), lambda i: (i, 0)),
        compiler_params=pltpu.CompilerParams(
            dimension_semantics=("parallel",),        # megacore sharding (v7x)
            vmem_limit_bytes=vmem_limit,
        ),
        cost_estimate=pl.CostEstimate(
            flops=7 * R * F,
            transcendentals=2 * R,
            bytes_accessed=2 * R * F * itemsize,
        ),
    )(x2d, ab)
    return out


class DecoderPallas:
    """JAX/Pallas equivalent of the PyTorch Decoder module."""

    def __init__(self, features: int, eps: float = 1e-6):
        self.features = features
        self.eps = eps
        # LayerNormalization parameters (nn.Parameter defaults: ones / zeros).
        self.alpha = jnp.ones((features,), dtype=jnp.float32)
        self.bias = jnp.zeros((features,), dtype=jnp.float32)
        # TODO(synk): decoder layers are passed in as an opaque nn.ModuleList in
        # the reference module (no definition provided); the stack here has zero
        # layers, so the per-layer loop is a no-op.
        self.layers = []

    def __call__(self, x, encoder_output, src_mask, tgt_mask):
        for layer in self.layers:
            x = layer(x, encoder_output, src_mask, tgt_mask)
        B, S, F = x.shape
        x2d = x.reshape(B * S, F)
        y2d = layer_norm_pallas(x2d, self.alpha, self.bias, eps=self.eps)
        return y2d.reshape(B, S, F)


def _reference_layernorm(x, alpha, bias, eps):
    # Pure-JAX reference matching torch semantics (unbiased std, eps on std).
    mean = jnp.mean(x, axis=-1, keepdims=True)
    diff = x - mean
    var = jnp.sum(diff * diff, axis=-1, keepdims=True) / (x.shape[-1] - 1)
    std = jnp.sqrt(var)
    return alpha * (diff / (std + eps)) + bias


if __name__ == "__main__":
    key = jax.random.PRNGKey(0)
    batch, seq, features = 2, 8, 32
    k1, k2 = jax.random.split(key, 2)

    x = jax.random.normal(k1, (batch, seq, features), dtype=jnp.float32)
    encoder_output = jax.random.normal(k2, (batch, seq, features), dtype=jnp.float32)
    src_mask = jnp.ones((batch, 1, 1, seq), dtype=jnp.float32)
    tgt_mask = jnp.tril(jnp.ones((seq, seq), dtype=jnp.float32))[None, None]

    decoder = DecoderPallas(features)
    out = decoder(x, encoder_output, src_mask, tgt_mask)
    out = jax.block_until_ready(out)

    ref = _reference_layernorm(x, decoder.alpha, decoder.bias, decoder.eps)
    assert out.shape == (batch, seq, features)
    assert jnp.allclose(out, ref, atol=1e-5, rtol=1e-5), "mismatch vs reference"

    print("KERNEL_OK")
</pallas_src>

<mosaic_0001>
module attributes {stable_mosaic.version = 11 : i64} {
  func.func @_layernorm_kernel(%arg0: i32, %arg1: memref<8x32xf32, #tpu.memory_space<vmem>>, %arg2: memref<8x32xf32, #tpu.memory_space<vmem>>, %arg3: memref<8x32xf32, #tpu.memory_space<vmem>>) attributes {dimension_semantics = [#tpu.dimension_semantics<parallel>], iteration_bounds = array<i64: 2>, scalar_prefetch = 0 : i64, scratch_operands = 0 : i64, tpu.core_type = #tpu.core_type<tc>, window_params = [{transform_indices = @transform_0, window_bounds = array<i64: 8, 32>}, {pipeline_mode = #tpu.pipeline_mode<synchronous>, transform_indices = @transform_1, window_bounds = array<i64: 8, 32>}, {transform_indices = @transform_2, window_bounds = array<i64: 8, 32>}]} {
    %c0 = arith.constant 0 : index
    %c0_0 = arith.constant 0 : index
    %0 = vector.load %arg1[%c0, %c0_0] : memref<8x32xf32, #tpu.memory_space<vmem>>, vector<8x32xf32>
    %c0_1 = arith.constant 0 : index
    %c0_2 = arith.constant 0 : index
    %1 = vector.load %arg2[%c0_1, %c0_2] : memref<8x32xf32, #tpu.memory_space<vmem>>, vector<8x32xf32>
    %2 = vector.extract_strided_slice %1 {offsets = [0, 0], sizes = [1, 32], strides = [1, 1]} : vector<8x32xf32> to vector<1x32xf32>
    %3 = vector.extract_strided_slice %1 {offsets = [1, 0], sizes = [1, 32], strides = [1, 1]} : vector<8x32xf32> to vector<1x32xf32>
    %cst = arith.constant dense<0.000000e+00> : vector<8xf32>
    %4 = vector.multi_reduction <add>, %0, %cst [1] : vector<8x32xf32> to vector<8xf32>
    %5 = vector.shape_cast %4 : vector<8xf32> to vector<8x1xf32>
    %cst_3 = arith.constant 3.125000e-02 : f32
    %6 = vector.broadcast %cst_3 : f32 to vector<8x1xf32>
    %7 = arith.mulf %5, %6 : vector<8x1xf32>
    %8 = vector.broadcast %7 : vector<8x1xf32> to vector<8x32xf32>
    %9 = arith.subf %0, %8 : vector<8x32xf32>
    %10 = arith.mulf %9, %9 : vector<8x32xf32>
    %cst_4 = arith.constant dense<0.000000e+00> : vector<8xf32>
    %11 = vector.multi_reduction <add>, %10, %cst_4 [1] : vector<8x32xf32> to vector<8xf32>
    %12 = vector.shape_cast %11 : vector<8xf32> to vector<8x1xf32>
    %cst_5 = arith.constant 3.100000e+01 : f32
    %13 = vector.broadcast %cst_5 : f32 to vector<8x1xf32>
    %14 = arith.divf %12, %13 : vector<8x1xf32>
    %15 = math.sqrt %14 : vector<8x1xf32>
    %cst_6 = arith.constant 9.99999997E-7 : f32
    %16 = vector.broadcast %cst_6 : f32 to vector<8x1xf32>
    %17 = arith.addf %15, %16 : vector<8x1xf32>
    %18 = tpu.reciprocal %17 : vector<8x1xf32> -> vector<8x1xf32>
    %19 = vector.broadcast %18 : vector<8x1xf32> to vector<8x32xf32>
    %20 = arith.mulf %9, %19 : vector<8x32xf32>
    %21 = vector.broadcast %2 : vector<1x32xf32> to vector<8x32xf32>
    %22 = arith.mulf %21, %20 : vector<8x32xf32>
    %23 = vector.broadcast %3 : vector<1x32xf32> to vector<8x32xf32>
    %24 = arith.addf %22, %23 : vector<8x32xf32>
    %c0_7 = arith.constant 0 : index
    %c0_8 = arith.constant 0 : index
    %25 = vector.load %arg3[%c0_7, %c0_8] : memref<8x32xf32, #tpu.memory_space<vmem>>, vector<8x32xf32>
    tpu.vector_store %arg3[%c0_7, %c0_8], %24 {strides = array<i32>} : memref<8x32xf32, #tpu.memory_space<vmem>>, vector<8x32xf32>,
    return
  }
  func.func @transform_0(%arg0: i32) -> (i32, i32) {
    %c0_i32 = arith.constant 0 : i32
    %c0_i32_0 = arith.constant 0 : i32
    return %arg0, %c0_i32 : i32, i32
  }
  func.func @transform_1(%arg0: i32) -> (i32, i32) {
    %c0_i32 = arith.constant 0 : i32
    %c0_i32_0 = arith.constant 0 : i32
    %c0_i32_1 = arith.constant 0 : i32
    return %c0_i32, %c0_i32_0 : i32, i32
  }
  func.func @transform_2(%arg0: i32) -> (i32, i32) {
    %c0_i32 = arith.constant 0 : i32
    %c0_i32_0 = arith.constant 0 : i32
    return %arg0, %c0_i32 : i32, i32
  }
}

</mosaic_0001>

<llo_original>
// kernel: tpu_custom_call.1
$region0: #{tpu_custom_call.1}
  #allocation0 [shape = 'u32[]', space=smem, size = 0x4, offset = 0x4, fixed_abs, tag = 'smem constant byte address 0x4 - core index']
  #allocation1 [shape = 'u32[144,128]{1,0:T(1,128)}', space=vmem, size = 0x12000, scoped, tag = 'internal scratch']
  %s0 = inlined_call_operand.hbm [shape: f32[16,32], index: 0, kind: input, shape index: {}]
  %s1 = inlined_call_operand.hbm [shape: f32[8,32], index: 1, kind: input, shape index: {}]
  %s2 = inlined_call_operand.hbm [shape: f32[16,32], index: 2, kind: output, shape index: {}]
  %s3 = sld [smem:[#allocation0]]
  $region49: #{tpu_custom_call.1} parent=0
    _
  %s5 = ssub.s32 1, %s3
  %s6 = scalar_select 0, %s5, %s3
  $region1: #{tpu_custom_call.1} parent=0
    #allocation2 [shape = 'u8[8192]{0}', space=vmem, size = 0x2000, scoped, tag = 'input window, operand 0']
    #allocation3 [shape = 's32[2]{0}', space=sflag, size = 0x8, scoped, tag = 'scoped memory for tpu_custom_call.1']
    #allocation4 [shape = 's32[2]{0}', space=sflag, size = 0x8, scoped, tag = 'scoped memory for tpu_custom_call.1']
    #allocation5 [shape = 'u8[4096]{0}', space=vmem, size = 0x1000, scoped, tag = 'input window, operand 1, single buffered']
    #allocation6 [shape = 's32[1]{0}', space=sflag, size = 0x4, scoped, tag = 'scoped memory for tpu_custom_call.1']
    #allocation7 [shape = 'u8[8192]{0}', space=vmem, size = 0x2000, scoped, tag = 'output window, operand 0']
    %7 = vsyncpa [#allocation3], 0
    %s8 = scalar_lea.sflag [#allocation3], 1
    %9 = vsyncpa %s8, 0
    %10 = vsyncpa [#allocation6], 0
    %11 = vsyncpa [#allocation4], 0
    %s12 = scalar_lea.sflag [#allocation4], 1
    %13 = vsyncpa %s12, 0
    loop: start=0, step=1, limit=4
    $region2: #{tpu_custom_call.1} parent=1 // loop_pre_header
      _
    $region3: #{tpu_custom_call.1} parent=1 // loop_header
      %s15 = sphi 0, %s19
      %p16 = scmp.ge.s32.totalorder %s15, 4
      %s25 = sphi 0, %s27
      %s28 = sphi 0, %s25
      %s29 = sphi 0, %s28
      %s45 = sphi 0, %s29
      %s49 = sphi 0, %s49
      %s51 = sphi 0, %s49
      %s52 = sphi 0, %s51
      %s66 = sphi 0, %s52
      %s72 = sphi 0, %s74
      %s75 = sphi 0, %s72
      %s76 = sphi 0, %s75
      %s92 = sphi 0, %s76
    $region4: #{tpu_custom_call.1} parent=1 // loop_header_branch
      %18 = sbr.rel (%p16) target = $region8
    $region5: #{tpu_custom_call.1} parent=1 // loop_body
      %s20 = ssub.s32 %s15, 1
      %s21 = ssub.s32 %s15, 2
      %s22 = sadd.s32 %s15, 1
      %s23 = ssub.s32 %s15, %s22
      %p24 = scmp.eq.s32.totalorder %s23, 0
      %s26 = sadd.s32 %s25, 1
      %s27 = scalar_select %p24, %s25, %s26
      %p30 = pneg %p24
      %p31 = scmp.eq.s32.totalorder %s15, 1
      %p32 = por %p30, %p31
      %p33 = scmp.ne.s32.totalorder %s25, %s28
      %p34 = scmp.eq.s32.totalorder %s15, 0
      %p35 = por %p33, %p34
      %p36 = scmp.ne.s32.totalorder %s25, %s28
      %p37 = scmp.eq.s32.totalorder %s20, 1
      %p38 = por %p36, %p37
      %p39 = scmp.ne.s32.totalorder %s28, %s29
      %p40 = scmp.eq.s32.totalorder %s20, 0
      %p41 = por %p39, %p40
      %p42 = scmp.ne.s32.totalorder %s28, %s29
      %p43 = scmp.eq.s32.totalorder %s21, 1
      %p44 = por %p42, %p43
      %p46 = scmp.ne.s32.totalorder %s29, %s45
      %p47 = scmp.eq.s32.totalorder %s21, 0
      %p48 = por %p46, %p47
      %s50 = sadd.s32 %s49, 1
      %p53 = scmp.eq.s32.totalorder %s15, 1
      %p54 = scmp.ne.s32.totalorder %s49, %s51
      %p55 = scmp.eq.s32.totalorder %s15, 0
      %p56 = por %p54, %p55
      %p57 = scmp.ne.s32.totalorder %s49, %s51
      %p58 = scmp.eq.s32.totalorder %s20, 1
      %p59 = por %p57, %p58
      %p60 = scmp.ne.s32.totalorder %s51, %s52
      %p61 = scmp.eq.s32.totalorder %s20, 0
      %p62 = por %p60, %p61
      %p63 = scmp.ne.s32.totalorder %s51, %s52
      %p64 = scmp.eq.s32.totalorder %s21, 1
      %p65 = por %p63, %p64
      %p67 = scmp.ne.s32.totalorder %s52, %s66
      %p68 = scmp.eq.s32.totalorder %s21, 0
      %p69 = por %p67, %p68
      %s70 = ssub.s32 %s15, %s22
      %p71 = scmp.eq.s32.totalorder %s70, 0
      %s73 = sadd.s32 %s72, 1
      %s74 = scalar_select %p71, %s72, %s73
      %p77 = pneg %p71
      %p78 = scmp.eq.s32.totalorder %s15, 1
      %p79 = por %p77, %p78
      %p80 = scmp.ne.s32.totalorder %s72, %s75
      %p81 = scmp.eq.s32.totalorder %s15, 0
      %p82 = por %p80, %p81
      %p83 = scmp.ne.s32.totalorder %s72, %s75
      %p84 = scmp.eq.s32.totalorder %s20, 1
      %p85 = por %p83, %p84
      %p86 = scmp.ne.s32.totalorder %s75, %s76
      %p87 = scmp.eq.s32.totalorder %s20, 0
      %p88 = por %p86, %p87
      %p89 = scmp.ne.s32.totalorder %s75, %s76
      %p90 = scmp.eq.s32.totalorder %s21, 1
      %p91 = por %p89, %p90
      %p93 = scmp.ne.s32.totalorder %s76, %s92
      %p94 = scmp.eq.s32.totalorder %s21, 0
      %p95 = por %p93, %p94
      %p96 = scmp.le.s32.totalorder 1, %s15
      %p97 = scmp.lt.s32.totalorder %s15, 3
      %p98 = pnand %p96, %p97
      %p99 = pneg %p98
      // Predicated region
      $region9: #{tpu_custom_call.1} parent=5 // pred_check
        _
      $region10: #{tpu_custom_call.1} parent=5 // pred_check_branch
        %101 = sbr.rel (%p98) target = $region12
      $region11: #{tpu_custom_call.1} parent=5 // pred_region
        %s102 = ssub.s32 %s15, 1
        // Predicated region
        $region13: #{tpu_custom_call.1} parent=11 // pred_check
          %p103 = pneg %p62
        $region14: #{tpu_custom_call.1} parent=11 // pred_check_branch
          %105 = sbr.rel (%p103) target = $region16
        $region15: #{tpu_custom_call.1} parent=11 // pred_region
          %s107 = ssub.s32 128, 128
          %108 = vsyncadd [#allocation6], %s107
          %s110 = sshll.u32 [#allocation5], 4
          %s111 = int_to_ptr.vmem [resolvable:$true] %s110
          %113 = dma.hbm_to_vmem [thread:$0]  %s1, 128, %s111, [#allocation6]
        $region16: #{tpu_custom_call.1} parent=11 // pred_fallthru
          _
      $region12: #{tpu_custom_call.1} parent=5 // pred_fallthru
        _
      %p114 = scmp.lt.s32.totalorder %s15, 2
      // Predicated region
      $region17: #{tpu_custom_call.1} parent=5 // pred_check
        %p115 = pneg %p114
      $region18: #{tpu_custom_call.1} parent=5 // pred_check_branch
        %117 = sbr.rel (%p115) target = $region20
      $region19: #{tpu_custom_call.1} parent=5 // pred_region
        // Predicated region
        $region21: #{tpu_custom_call.1} parent=19 // pred_check
          %p118 = pneg %p35
        $region22: #{tpu_custom_call.1} parent=19 // pred_check_branch
          %120 = sbr.rel (%p118) target = $region24
        $region23: #{tpu_custom_call.1} parent=19 // pred_region
          %s121 = sand.u32 %s25, 1
          %s122 = scalar_lea.sflag [#allocation3], %s121
          %s123 = sand.u32 %s25, 1
          %s124 = smul.addr %s123, 8
          %s125 = scalar_lea.vmem [#allocation2], %s124
          %s127 = ssub.s32 128, 128
          %128 = vsyncadd %s122, %s127
          %s129 = smul.addr %s15, 128
          %s130 = scalar_lea.hbm %s0, %s129
          %s132 = sshll.u32 %s125, 4
          %s133 = int_to_ptr.vmem [resolvable:$true] %s132
          %135 = dma.hbm_to_vmem [thread:$0]  %s130, 128, %s133, %s122
        $region24: #{tpu_custom_call.1} parent=19 // pred_fallthru
          _
      $region20: #{tpu_custom_call.1} parent=5 // pred_fallthru
        _
      %p136 = scmp.le.s32.totalorder 1, %s15
      %p137 = scmp.lt.s32.totalorder %s15, 3
      %p138 = pnand %p136, %p137
      %p139 = pneg %p138
      // Predicated region
      $region25: #{tpu_custom_call.1} parent=5 // pred_check
        _
      $region26: #{tpu_custom_call.1} parent=5 // pred_check_branch
        %141 = sbr.rel (%p138) target = $region28
      $region27: #{tpu_custom_call.1} parent=5 // pred_region
        %s142 = ssub.s32 %s15, 1
        %s143 = sand.u32 %s28, 1
        %s144 = scalar_lea.sflag [#allocation3], %s143
        %s145 = sand.u32 %s28, 1
        %s146 = smul.addr %s145, 8
        %s147 = scalar_lea.vmem [#allocation2], %s146
        // Predicated region
        $region29: #{tpu_custom_call.1} parent=27 // pred_check
          %p148 = pneg %p41
        $region30: #{tpu_custom_call.1} parent=27 // pred_check_branch
          %150 = sbr.rel (%p148) target = $region32
        $region31: #{tpu_custom_call.1} parent=27 // pred_region
          %151 = dma.done %s144, 128
        $region32: #{tpu_custom_call.1} parent=27 // pred_fallthru
          _
        // Predicated region
        $region33: #{tpu_custom_call.1} parent=27 // pred_check
          %p152 = pneg %p62
        $region34: #{tpu_custom_call.1} parent=27 // pred_check_branch
          %154 = sbr.rel (%p152) target = $region36
        $region35: #{tpu_custom_call.1} parent=27 // pred_region
          %155 = dma.done [#allocation6], 128
        $region36: #{tpu_custom_call.1} parent=27 // pred_fallthru
          _
        %s156 = sand.u32 %s28, 1
        %s157 = scalar_lea.sflag [#allocation3], %s156
        %s158 = sand.u32 %s28, 1
        %s159 = smul.addr %s158, 8
        %s160 = scalar_lea.vmem [#allocation2], %s159
        %p161 = pneg %p41
        %p162 = pneg %p38
        %p163 = pneg %p62
        %p164 = pneg %p59
        %p165 = pneg %p88
        %p166 = pneg %p85
        %s167 = sand.u32 %s75, 1
        %s168 = scalar_lea.sflag [#allocation4], %s167
        %s169 = sand.u32 %s75, 1
        %s170 = smul.addr %s169, 8
        %s171 = scalar_lea.vmem [#allocation7], %s170
        %v172 = vld [vmem:[%s147] sm:$0xff]
        %v173 = vld [vmem:[#allocation5] sm:$0xff]
        %vm174 = vcmask 261120
        %v175 = vsel %vm174, %v172, 0.0
        %176 = vadd.xlane.f32.xlu0 %v175
        %v177 = vpop.xlane.xlu0 %176
        %v178 = vmul.f32 %v177, 0.03125
        %v179 = vsub.f32 %v172, %v178
        %v180 = vmul.f32 %v179, %v179
        %v181 = vsel %vm174, %v180, 0.0
        %182 = vadd.xlane.f32.xlu0 %v181
        %v183 = vpop.xlane.xlu0 %182
        %v184 = vrcp.pop 31.0
        %v185 = vmul.f32 %v183, %v184
        %v186 = vrsqrt.pop %v185
        %v187 = vmul.f32 %v185, %v186
        %vm188 = vcmp.eq.f32.partialorder %v185, inf
        %v189 = vsel %vm188, %v185, %v187
        %vm190 = vcmp.eq.f32.partialorder %v185, 0.0
        %v191 = vand.u32 %v185, 2147483648
        %v192 = vsel %vm190, %v191, %v189
        %v193 = vadd.f32 %v192, 1e-06
        %v194 = vrcp.pop %v193
        %v195 = vmul.f32 %v179, %v194
        %v196 = vlaneseq
        %v197 = vshrl.u32 %v196, 7
        %v198 = vsub.s32 0, %v197
        %v199 = vrot.slane %v173, %v198
        %v200 = vmul.f32 %v199, %v195
        %v201 = vlaneseq
        %v202 = vshrl.u32 %v201, 7
        %v203 = vsub.s32 1, %v202
        %v204 = vrot.slane %v173, %v203
        %v205 = vadd.f32 %v200, %v204
        %206 = vst.msk [vmem:[%s171] sm:$0xff] %vm174, %v205
        %s207 = sand.u32 %s75, 1
        %s208 = scalar_lea.sflag [#allocation4], %s207
        %s209 = sand.u32 %s75, 1
        %s210 = smul.addr %s209, 8
        %s211 = scalar_lea.vmem [#allocation7], %s210
        // Predicated region
        $region37: #{tpu_custom_call.1} parent=27 // pred_check
          %p212 = pneg %p85
        $region38: #{tpu_custom_call.1} parent=27 // pred_check_branch
          %214 = sbr.rel (%p212) target = $region40
        $region39: #{tpu_custom_call.1} parent=27 // pred_region
          %s216 = ssub.s32 128, 128
          %217 = vsyncadd %s208, %s216
          %s218 = smul.addr %s20, 128
          %s219 = scalar_lea.hbm %s2, %s218
          %s221 = sshll.u32 %s211, 4
          %s222 = int_to_ptr.vmem [resolvable:$true] %s221
          %224 = dma.vmem_to_hbm [thread:$0]  %s222, 128, %s219, %s208
        $region40: #{tpu_custom_call.1} parent=27 // pred_fallthru
          _
      $region28: #{tpu_custom_call.1} parent=5 // pred_fallthru
        _
      %p225 = scmp.le.s32.totalorder 2, %s15
      // Predicated region
      $region41: #{tpu_custom_call.1} parent=5 // pred_check
        %p226 = pneg %p225
      $region42: #{tpu_custom_call.1} parent=5 // pred_check_branch
        %228 = sbr.rel (%p226) target = $region44
      $region43: #{tpu_custom_call.1} parent=5 // pred_region
        %s229 = ssub.s32 %s15, 2
        // Predicated region
        $region45: #{tpu_custom_call.1} parent=43 // pred_check
          %p230 = pneg %p91
        $region46: #{tpu_custom_call.1} parent=43 // pred_check_branch
          %232 = sbr.rel (%p230) target = $region48
        $region47: #{tpu_custom_call.1} parent=43 // pred_region
          %s233 = sand.u32 %s76, 1
          %s234 = scalar_lea.sflag [#allocation4], %s233
          %s235 = sand.u32 %s76, 1
          %s236 = smul.addr %s235, 8
          %s237 = scalar_lea.vmem [#allocation7], %s236
          %238 = dma.done %s234, 128
        $region48: #{tpu_custom_call.1} parent=43 // pred_fallthru
          _
      $region44: #{tpu_custom_call.1} parent=5 // pred_fallthru
        _
    $region6: #{tpu_custom_call.1} parent=1 // loop_footer
      %s19 = sadd.s32 1, %s15
    $region7: #{tpu_custom_call.1} parent=1 // loop_footer_branch
      %14 = sbr.rel target = $region3
    $region8: #{tpu_custom_call.1} parent=1 // loop_exit
      _
    %239 = vsyncpa [#allocation3], 1
    %s240 = scalar_lea.sflag [#allocation3], 1
    %241 = vsyncpa %s240, 1
    %242 = vsyncpa [#allocation6], 1
    %243 = vsyncpa [#allocation4], 1
    %s244 = scalar_lea.sflag [#allocation4], 1
    %245 = vsyncpa %s244, 1

</llo_original>
